<compile_context>
chip_gen: v7x
topology: tpu7x:2x2x1
jax: 0.10.0
libtpu: 0.0.40
codegen_flags: <defaults>
</compile_context>

<pallas_src>
import jax
import jax.numpy as jnp
from jax.experimental import pallas as pl
from jax.experimental.pallas import tpu as pltpu

_LANE = 128      # vreg lane width
_SUBLANE = 8     # f32 sublane count
_TM_MAX = 4096   # rows per tile -> 4096 * 128 * 4 B = 2 MiB f32 (VMEM-safe on v7x)


def logistic_kernel(w_ref, b_ref, x_ref, o_ref):
    # w_ref: (1, 1) SMEM scalar (Linear weight)
    # b_ref: (1,)   SMEM scalar (Linear bias)
    # x_ref / o_ref: (TM, 128) lane-dense VMEM tiles
    x = x_ref[...]
    w = w_ref[0, 0]
    b = b_ref[0]
    z = x * w + b                                              # Linear(1, 1)
    o_ref[...] = pl.reciprocal(1.0 + jnp.exp(-z), approx=True)  # Sigmoid (EUP)


def logistic_forward(x, w, b):
    """x: (..., 1) f32, w: (1, 1) f32, b: (1,) f32  ->  same shape as x."""
    orig_shape = x.shape
    n = x.size

    # Lane-dense repack: flatten, pad, view as (rows, 128).
    rows = pl.cdiv(n, _LANE)
    rows = pl.cdiv(rows, _SUBLANE) * _SUBLANE      # sublane-aligned row count
    tm = min(_TM_MAX, rows)                        # tile rows (full extent if small)
    rows = pl.cdiv(rows, tm) * tm                  # rows divisible by the tile
    padded = rows * _LANE

    xf = jnp.pad(jnp.ravel(x), (0, padded - n)).reshape(rows, _LANE)

    out2 = pl.pallas_call(
        logistic_kernel,
        out_shape=jax.ShapeDtypeStruct((rows, _LANE), x.dtype),
        grid=(rows // tm,),
        in_specs=[
            pl.BlockSpec(memory_space=pltpu.MemorySpace.SMEM),  # weight (1,1)
            pl.BlockSpec(memory_space=pltpu.MemorySpace.SMEM),  # bias (1,)
            pl.BlockSpec((tm, _LANE), lambda i: (i, 0)),        # x tile
        ],
        out_specs=pl.BlockSpec((tm, _LANE), lambda i: (i, 0)),
        compiler_params=pltpu.CompilerParams(
            dimension_semantics=("parallel",)),                 # 2x on v7x dual-TC
    )(w, b, xf)

    # Drop the padding lanes and restore the original (N, 1) layout.
    return out2.reshape(-1)[:n].reshape(orig_shape)


if __name__ == "__main__":
    key = jax.random.PRNGKey(0)
    kx, kw, kb = jax.random.split(key, 3)

    # Small deterministic inputs: batch of 8 scalar features, shape (8, 1),
    # matching nn.Linear(1, 1)'s input convention.
    x = jax.random.normal(kx, (8, 1), dtype=jnp.float32)

    # Deterministic parameter init (PyTorch Linear(1,1) -> U(-1, 1) shapes).
    w = jax.random.uniform(kw, (1, 1), dtype=jnp.float32, minval=-1.0, maxval=1.0)
    b = jax.random.uniform(kb, (1,), dtype=jnp.float32, minval=-1.0, maxval=1.0)

    out = logistic_forward(x, w, b)
    jax.block_until_ready(out)

    # Sanity check against plain-JAX reference of the same forward pass.
    # (Tolerance loosened slightly for the EUP approx reciprocal.)
    ref = jax.nn.sigmoid(x @ w.T + b)
    assert out.shape == ref.shape, (out.shape, ref.shape)
    assert jnp.allclose(out, ref, atol=2e-3, rtol=2e-3), (out, ref)

    # Also exercise the padded / sliced path with a non-multiple-of-128 batch.
    x2 = jax.random.normal(kx, (300, 1), dtype=jnp.float32)
    out2 = logistic_forward(x2, w, b)
    jax.block_until_ready(out2)
    ref2 = jax.nn.sigmoid(x2 @ w.T + b)
    assert jnp.allclose(out2, ref2, atol=2e-3, rtol=2e-3)

    print("KERNEL_OK")
</pallas_src>

<mosaic_0001>
module attributes {stable_mosaic.version = 11 : i64} {
  func.func @logistic_kernel(%arg0: i32, %arg1: memref<1x1xf32, #tpu.memory_space<smem>>, %arg2: memref<1xf32, #tpu.memory_space<smem>>, %arg3: memref<8x128xf32, #tpu.memory_space<vmem>>, %arg4: memref<8x128xf32, #tpu.memory_space<vmem>>) attributes {dimension_semantics = [#tpu.dimension_semantics<parallel>], iteration_bounds = array<i64: 1>, scalar_prefetch = 0 : i64, scratch_operands = 0 : i64, tpu.core_type = #tpu.core_type<tc>, window_params = [{transform_indices = @transform_0, window_bounds = array<i64: 1, 1>}, {transform_indices = @transform_1, window_bounds = array<i64: 1>}, {transform_indices = @transform_2, window_bounds = array<i64: 8, 128>}, {transform_indices = @transform_3, window_bounds = array<i64: 8, 128>}]} {
    %c0 = arith.constant 0 : index
    %c0_0 = arith.constant 0 : index
    %0 = vector.load %arg3[%c0, %c0_0] : memref<8x128xf32, #tpu.memory_space<vmem>>, vector<8x128xf32>
    %c0_1 = arith.constant 0 : index
    %c0_2 = arith.constant 0 : index
    %1 = memref.load %arg1[%c0_1, %c0_2] : memref<1x1xf32, #tpu.memory_space<smem>>
    %c0_3 = arith.constant 0 : index
    %2 = memref.load %arg2[%c0_3] : memref<1xf32, #tpu.memory_space<smem>>
    %3 = vector.broadcast %1 : f32 to vector<8x128xf32>
    %4 = arith.mulf %0, %3 : vector<8x128xf32>
    %5 = vector.broadcast %2 : f32 to vector<8x128xf32>
    %6 = arith.addf %4, %5 : vector<8x128xf32>
    %cst = arith.constant 0.000000e+00 : f32
    %7 = vector.broadcast %cst : f32 to vector<8x128xf32>
    %8 = arith.subf %7, %6 : vector<8x128xf32>
    %9 = math.exp %8 : vector<8x128xf32>
    %cst_4 = arith.constant 1.000000e+00 : f32
    %10 = vector.broadcast %cst_4 : f32 to vector<8x128xf32>
    %11 = arith.addf %10, %9 : vector<8x128xf32>
    %12 = tpu.reciprocal %11 {approx = true} : vector<8x128xf32> -> vector<8x128xf32>
    %c0_5 = arith.constant 0 : index
    %c0_6 = arith.constant 0 : index
    %13 = vector.load %arg4[%c0_5, %c0_6] : memref<8x128xf32, #tpu.memory_space<vmem>>, vector<8x128xf32>
    tpu.vector_store %arg4[%c0_5, %c0_6], %12 {strides = array<i32>} : memref<8x128xf32, #tpu.memory_space<vmem>>, vector<8x128xf32>,
    return
  }
  func.func @transform_0(%arg0: i32) -> (i32, i32) {
    %c0_i32 = arith.constant 0 : i32
    %c0_i32_0 = arith.constant 0 : i32
    %c0_i32_1 = arith.constant 0 : i32
    return %c0_i32, %c0_i32_0 : i32, i32
  }
  func.func @transform_1(%arg0: i32) -> i32 {
    %c0_i32 = arith.constant 0 : i32
    %c0_i32_0 = arith.constant 0 : i32
    return %c0_i32 : i32
  }
  func.func @transform_2(%arg0: i32) -> (i32, i32) {
    %c0_i32 = arith.constant 0 : i32
    %c0_i32_0 = arith.constant 0 : i32
    return %arg0, %c0_i32 : i32, i32
  }
  func.func @transform_3(%arg0: i32) -> (i32, i32) {
    %c0_i32 = arith.constant 0 : i32
    %c0_i32_0 = arith.constant 0 : i32
    return %arg0, %c0_i32 : i32, i32
  }
}

</mosaic_0001>

<llo_original>
// kernel: tpu_custom_call.1
$region0: #{tpu_custom_call.1}
  #allocation0 [shape = 'u32[]', space=smem, size = 0x4, offset = 0x4, fixed_abs, tag = 'smem constant byte address 0x4 - core index']
  #allocation1 [shape = 'u32[144,128]{1,0:T(1,128)}', space=vmem, size = 0x12000, scoped, tag = 'internal scratch']
  #allocation2 [shape = 'f32[1,1]{1,0:T(1,128)S(6)}', space=smem, size = 0x200, scoped, tag = 'scoped memory for tpu_custom_call.1']
  #allocation3 [shape = 'f32[1]{0:T(128)S(6)}', space=smem, size = 0x200, scoped, tag = 'scoped memory for tpu_custom_call.1']
  %s0 = inlined_call_operand.<no memory space> [shape: f32[1,1], index: 0, kind: input, shape index: {}]
  %s1 = inlined_call_operand.<no memory space> [shape: f32[1], index: 1, kind: input, shape index: {}]
  %s2 = inlined_call_operand.hbm [shape: f32[8,128], index: 2, kind: input, shape index: {}]
  %s3 = inlined_call_operand.hbm [shape: f32[8,128], index: 3, kind: output, shape index: {}]
  %s4 = sld [smem:[#allocation0]]
  $region26: #{tpu_custom_call.1} parent=0
    _
  %s6 = ssub.s32 1, %s4
  %s7 = scalar_select 0, %s6, %s4
  %8 = sst [smem:[#allocation2]] %s0
  %9 = sst [smem:[#allocation3]] %s1
  $region1: #{tpu_custom_call.1} parent=0
    #allocation4 [shape = 'u8[4096]{0}', space=vmem, size = 0x1000, scoped, tag = 'input window, operand 2, single buffered']
    #allocation5 [shape = 's32[1]{0}', space=sflag, size = 0x4, scoped, tag = 'scoped memory for tpu_custom_call.1']
    #allocation6 [shape = 's32[1]{0}', space=sflag, size = 0x4, scoped, tag = 'scoped memory for tpu_custom_call.1']
    #allocation7 [shape = 'u8[4096]{0}', space=vmem, size = 0x1000, scoped, tag = 'output window, operand 0, single buffered']
    %10 = vsyncpa [#allocation5], 0
    %11 = vsyncpa [#allocation6], 0
    // Predicated region
    $region2: #{tpu_custom_call.1} parent=1 // pred_check
      _
    $region3: #{tpu_custom_call.1} parent=1 // pred_check_branch
      %13 = sbr.rel (0) target = $region5
    $region4: #{tpu_custom_call.1} parent=1 // pred_region
      _
    $region5: #{tpu_custom_call.1} parent=1 // pred_fallthru
      _
    // Predicated region
    $region6: #{tpu_custom_call.1} parent=1 // pred_check
      _
    $region7: #{tpu_custom_call.1} parent=1 // pred_check_branch
      %15 = sbr.rel (0) target = $region9
    $region8: #{tpu_custom_call.1} parent=1 // pred_region
      _
    $region9: #{tpu_custom_call.1} parent=1 // pred_fallthru
      _
    // Predicated region
    $region10: #{tpu_custom_call.1} parent=1 // pred_check
      _
    $region11: #{tpu_custom_call.1} parent=1 // pred_check_branch
      %17 = sbr.rel (0) target = $region13
    $region12: #{tpu_custom_call.1} parent=1 // pred_region
      %s19 = ssub.s32 128, 128
      %20 = vsyncadd [#allocation5], %s19
      %s22 = sshll.u32 [#allocation4], 4
      %s23 = int_to_ptr.vmem [resolvable:$true] %s22
      %25 = dma.hbm_to_vmem [thread:$0]  %s2, 128, %s23, [#allocation5]
    $region13: #{tpu_custom_call.1} parent=1 // pred_fallthru
      _
    // Predicated region
    $region14: #{tpu_custom_call.1} parent=1 // pred_check
      _
    $region15: #{tpu_custom_call.1} parent=1 // pred_check_branch
      %27 = sbr.rel (0) target = $region17
    $region16: #{tpu_custom_call.1} parent=1 // pred_region
      %28 = dma.done [#allocation5], 128
    $region17: #{tpu_custom_call.1} parent=1 // pred_fallthru
      _
    %v29 = vld [vmem:[#allocation4] sm:$0xff]
    %s30 = sld [smem:[#allocation2]]
    %s31 = sld [smem:[#allocation3]]
    %v32 = vstv %s30
    %v33 = vmul.f32 %v29, %v32
    %v34 = vstv %s31
    %v35 = vadd.f32 %v33, %v34
    %v36 = vsub.f32 0.0, %v35
    %v37 = vmul.f32 %v36, 1.442695
    %v38 = vpow.pop %v37
    %v39 = vadd.f32 %v38, 1.0
    %v40 = vrcp.pop %v39
    %41 = vst [vmem:[#allocation7] sm:$0xff] %v40
    // Predicated region
    $region18: #{tpu_custom_call.1} parent=1 // pred_check
      _
    $region19: #{tpu_custom_call.1} parent=1 // pred_check_branch
      %43 = sbr.rel (0) target = $region21
    $region20: #{tpu_custom_call.1} parent=1 // pred_region
      %s45 = ssub.s32 128, 128
      %46 = vsyncadd [#allocation6], %s45
      %s48 = sshll.u32 [#allocation7], 4
      %s49 = int_to_ptr.vmem [resolvable:$true] %s48
      %51 = dma.vmem_to_hbm [thread:$0]  %s49, 128, %s3, [#allocation6]
    $region21: #{tpu_custom_call.1} parent=1 // pred_fallthru
      _
    // Predicated region
    $region22: #{tpu_custom_call.1} parent=1 // pred_check
      _
    $region23: #{tpu_custom_call.1} parent=1 // pred_check_branch
      %53 = sbr.rel (0) target = $region25
    $region24: #{tpu_custom_call.1} parent=1 // pred_region
      %54 = dma.done [#allocation6], 128
    $region25: #{tpu_custom_call.1} parent=1 // pred_fallthru
      _
    %55 = vsyncpa [#allocation5], 1
    %56 = vsyncpa [#allocation6], 1

</llo_original>
